<compile_context>
chip_gen: v5e
topology: v5e:2x2
jax: 0.10.0
libtpu: 0.0.40
codegen_flags: <defaults>
</compile_context>

<pallas_src>
import functools
import math

import jax
import jax.numpy as jnp
from jax.experimental import pallas as pl
from jax.experimental.pallas import tpu as pltpu


def _round_up(x, m):
    return -(-x // m) * m


def _modified_smooth_l1_kernel(t_ref, p_ref, o_ref, *, alpha):
    # Hoisted Python constants.
    inv_alpha = 1.0 / alpha
    half_over_alpha = 0.5 / alpha
    half_alpha = 0.5 * alpha

    # f32 compute regardless of I/O dtype (free: VPU has huge slack here).
    t = t_ref[...].astype(jnp.float32)
    p = p_ref[...].astype(jnp.float32)
    diff = jnp.abs(t - p)
    quad = half_alpha * diff * diff
    lin = diff - half_over_alpha
    # Dead-zone clamp applied last (matches PyTorch); both comparators are <=.
    loss = jnp.where(diff <= 0.01,
                     jnp.zeros_like(diff),
                     jnp.where(diff <= inv_alpha, quad, lin))
    o_ref[...] = loss.astype(o_ref.dtype)


def _pallas_slab(t2, p2, alpha, grid, block, *,
                 vmem_limit_bytes=32 * 1024 * 1024):
    """Run the elementwise kernel over a 2-D slab with the given grid/block."""
    rows, cols = t2.shape
    elem_bytes = jnp.dtype(t2.dtype).itemsize
    total = rows * cols
    cost = pl.CostEstimate(flops=6 * total,
                           transcendentals=0,
                           bytes_accessed=3 * total * elem_bytes)
    kernel = functools.partial(_modified_smooth_l1_kernel, alpha=float(alpha))
    spec = pl.BlockSpec(block, lambda i: (i, 0))
    return pl.pallas_call(
        kernel,
        out_shape=jax.ShapeDtypeStruct((rows, cols), t2.dtype),
        grid_spec=pltpu.PrefetchScalarGridSpec(
            num_scalar_prefetch=0,
            grid=grid,
            in_specs=[spec, spec],
            out_specs=spec,
        ),
        compiler_params=pltpu.CompilerParams(
            dimension_semantics=("parallel",),
            # 3 streams x 2 buffers x <=4 MiB blocks ~= 24 MiB working set;
            # 32 MiB is safe on v5e/v6e (128 MiB phys) and v7x (64 MiB phys).
            vmem_limit_bytes=vmem_limit_bytes,
        ),
        cost_estimate=cost,
    )(t2, p2)


def _modified_smooth_l1_jnp(t, p, alpha):
    # Used only for the < lane_width leftover tail (negligible work); upcast
    # to f32 to match the in-kernel precision exactly.
    t32 = t.astype(jnp.float32)
    p32 = p.astype(jnp.float32)
    diff = jnp.abs(t32 - p32)
    loss = jnp.where(diff <= 1.0 / alpha,
                     0.5 * alpha * diff * diff,
                     diff - 0.5 / alpha)
    loss = jnp.where(diff <= 0.01, jnp.zeros_like(loss), loss)
    return loss.astype(t.dtype)


def modified_smooth_l1_loss(normed_targets, pos_reg, alpha, *,
                            lane_width=1024,
                            block_bytes=4 * 1024 * 1024):
    """Elementwise modified smooth-L1 loss via Pallas.

    Accepts any (identical) shape for `normed_targets` / `pos_reg`; returns
    the per-element loss of the same shape and dtype (no reduction, like the
    PyTorch module).
    """
    assert normed_targets.shape == pos_reg.shape
    assert normed_targets.dtype == pos_reg.dtype

    orig_shape = normed_targets.shape
    dtype = normed_targets.dtype
    total = math.prod(orig_shape) if orig_shape else 1

    if total == 0:
        return jnp.zeros(orig_shape, dtype)

    t_flat = normed_targets.reshape(-1)
    p_flat = pos_reg.reshape(-1)

    C = lane_width                          # multiple of 128 lanes
    elem_bytes = jnp.dtype(dtype).itemsize
    rows = total // C
    bulk = rows * C
    tail = total - bulk

    parts = []

    if rows > 0:
        t2 = t_flat[:bulk].reshape(rows, C)
        p2 = p_flat[:bulk].reshape(rows, C)

        # Rows per block targeting ~block_bytes per input stream; multiple of
        # 32 sublanes so f32/bf16/int8/fp8 packings are all native.
        row_tile = max(32, (block_bytes // (C * elem_bytes)) // 32 * 32)
        if rows <= 32:
            # Truly small slab: single block == full array dims (exempt from
            # the (8,128) divisibility rule), no pipeline overhead.
            grid, block = (1,), (rows, C)
        else:
            # Guarantee >= 2 grid steps so input/output DMAs overlap and the
            # "parallel" axis can shard across v7x's two TensorCores.
            row_tile = min(row_tile, _round_up(-(-rows // 2), 32))
            grid, block = (pl.cdiv(rows, row_tile),), (row_tile, C)

        bulk_out = _pallas_slab(t2, p2, alpha, grid, block)
        parts.append(bulk_out.reshape(-1))

    if tail > 0:
        if rows > 0:
            # < lane_width leftover elements: plain jnp (fuses with the
            # concatenate below; cheaper than a second pallas launch).
            parts.append(_modified_smooth_l1_jnp(t_flat[bulk:],
                                                 p_flat[bulk:], alpha))
        else:
            # Whole problem is smaller than one lane row: one tiny block
            # covering the full (1, total) array.
            out = _pallas_slab(t_flat.reshape(1, total),
                               p_flat.reshape(1, total),
                               alpha, (1,), (1, total))
            parts.append(out.reshape(-1))

    out_flat = parts[0] if len(parts) == 1 else jnp.concatenate(parts)
    return out_flat.reshape(orig_shape)


def modified_smooth_l1_loss_ref(normed_targets, pos_reg, alpha):
    diff = jnp.abs(normed_targets - pos_reg)
    loss = jnp.where(diff <= 1.0 / alpha, 0.5 * alpha * diff * diff,
                     diff - 0.5 / alpha)
    return jnp.where(diff <= 0.01, jnp.zeros_like(loss), loss)


if __name__ == "__main__":
    # Module __init__ only takes the scalar alpha; no learnable parameters.
    alpha = 9.0  # L1_regression_alpha (typical config value)

    key = jax.random.PRNGKey(0)
    k1, k2, k3, k4 = jax.random.split(key, 4)

    # Realistic small case: 256 positive anchors x 12 regression dims.
    # (Exercises the lane-dense single-block fast path, no tail.)
    N, D = 256, 12
    normed_targets = jax.random.normal(k1, (N, D), dtype=jnp.float32)
    pos_reg = jax.random.normal(k2, (N, D), dtype=jnp.float32)

    out = modified_smooth_l1_loss(normed_targets, pos_reg, alpha)
    out = jax.block_until_ready(out)
    ref = modified_smooth_l1_loss_ref(normed_targets, pos_reg, alpha)
    assert out.shape == (N, D) and out.dtype == jnp.float32
    assert jnp.allclose(out, ref, atol=1e-6, rtol=1e-6)

    # Second check: element count not divisible by 1024 — exercises the
    # multi-block bulk path (grid >= 2, uneven last block) plus the jnp tail,
    # with no input padding and no output slicing.
    N2, D2 = 600, 1000
    t2 = jax.random.normal(k3, (N2, D2), dtype=jnp.float32)
    p2 = jax.random.normal(k4, (N2, D2), dtype=jnp.float32)
    out2 = jax.block_until_ready(modified_smooth_l1_loss(t2, p2, alpha))
    ref2 = modified_smooth_l1_loss_ref(t2, p2, alpha)
    assert out2.shape == (N2, D2)
    assert jnp.allclose(out2, ref2, atol=1e-6, rtol=1e-6)

    # Third check: bf16 I/O with in-kernel f32 compute.
    t3 = t2.astype(jnp.bfloat16)
    p3 = p2.astype(jnp.bfloat16)
    out3 = jax.block_until_ready(modified_smooth_l1_loss(t3, p3, alpha))
    ref3 = modified_smooth_l1_loss_ref(t3.astype(jnp.float32),
                                       p3.astype(jnp.float32),
                                       alpha).astype(jnp.bfloat16)
    assert out3.dtype == jnp.bfloat16
    assert jnp.allclose(out3.astype(jnp.float32), ref3.astype(jnp.float32),
                        atol=1e-2, rtol=1e-2)

    print("KERNEL_OK")
</pallas_src>

<mosaic_0001>
module attributes {stable_mosaic.version = 11 : i64} {
  func.func @_modified_smooth_l1_kernel(%arg0: i32, %arg1: memref<3x1024xf32, #tpu.memory_space<vmem>>, %arg2: memref<3x1024xf32, #tpu.memory_space<vmem>>, %arg3: memref<3x1024xf32, #tpu.memory_space<vmem>>) attributes {dimension_semantics = [#tpu.dimension_semantics<parallel>], iteration_bounds = array<i64: 1>, scalar_prefetch = 0 : i64, scratch_operands = 0 : i64, tpu.core_type = #tpu.core_type<tc>, window_params = [{transform_indices = @transform_0, window_bounds = array<i64: 3, 1024>}, {transform_indices = @transform_1, window_bounds = array<i64: 3, 1024>}, {transform_indices = @transform_2, window_bounds = array<i64: 3, 1024>}]} {
    %c0 = arith.constant 0 : index
    %c0_0 = arith.constant 0 : index
    %0 = vector.load %arg1[%c0, %c0_0] : memref<3x1024xf32, #tpu.memory_space<vmem>>, vector<3x1024xf32>
    %c0_1 = arith.constant 0 : index
    %c0_2 = arith.constant 0 : index
    %1 = vector.load %arg2[%c0_1, %c0_2] : memref<3x1024xf32, #tpu.memory_space<vmem>>, vector<3x1024xf32>
    %2 = arith.subf %0, %1 : vector<3x1024xf32>
    %3 = math.absf %2 : vector<3x1024xf32>
    %cst = arith.constant 4.500000e+00 : f32
    %4 = vector.broadcast %cst : f32 to vector<3x1024xf32>
    %5 = arith.mulf %4, %3 : vector<3x1024xf32>
    %6 = arith.mulf %5, %3 : vector<3x1024xf32>
    %cst_3 = arith.constant 0.055555556 : f32
    %7 = vector.broadcast %cst_3 : f32 to vector<3x1024xf32>
    %8 = arith.subf %3, %7 : vector<3x1024xf32>
    %cst_4 = arith.constant 0.00999999977 : f32
    %9 = vector.broadcast %cst_4 : f32 to vector<3x1024xf32>
    %10 = arith.cmpf ole, %3, %9 : vector<3x1024xf32>
    %cst_5 = arith.constant 0.000000e+00 : f32
    %11 = vector.broadcast %cst_5 : f32 to vector<3x1024xf32>
    %cst_6 = arith.constant 0.111111112 : f32
    %12 = vector.broadcast %cst_6 : f32 to vector<3x1024xf32>
    %13 = arith.cmpf ole, %3, %12 : vector<3x1024xf32>
    %14 = arith.select %13, %6, %8 : vector<3x1024xi1>, vector<3x1024xf32>
    %15 = arith.select %10, %11, %14 : vector<3x1024xi1>, vector<3x1024xf32>
    %c0_7 = arith.constant 0 : index
    %c0_8 = arith.constant 0 : index
    %16 = vector.load %arg3[%c0_7, %c0_8] : memref<3x1024xf32, #tpu.memory_space<vmem>>, vector<3x1024xf32>
    tpu.vector_store %arg3[%c0_7, %c0_8], %15 {strides = array<i32>} : memref<3x1024xf32, #tpu.memory_space<vmem>>, vector<3x1024xf32>,
    return
  }
  func.func @transform_0(%arg0: i32) -> (i32, i32) {
    %c0_i32 = arith.constant 0 : i32
    %c0_i32_0 = arith.constant 0 : i32
    return %arg0, %c0_i32 : i32, i32
  }
  func.func @transform_1(%arg0: i32) -> (i32, i32) {
    %c0_i32 = arith.constant 0 : i32
    %c0_i32_0 = arith.constant 0 : i32
    return %arg0, %c0_i32 : i32, i32
  }
  func.func @transform_2(%arg0: i32) -> (i32, i32) {
    %c0_i32 = arith.constant 0 : i32
    %c0_i32_0 = arith.constant 0 : i32
    return %arg0, %c0_i32 : i32, i32
  }
}

</mosaic_0001>

<llo_original>
// kernel: tpu_custom_call.1
$region0: #{tpu_custom_call.1}
  #allocation0 [shape = 'u32[]', space=smem, size = 0x4, offset = 0x4, fixed_abs, tag = 'smem constant byte address 0x4 - core index']
  #allocation1 [shape = 'u32[72,128]{1,0:T(1,128)}', space=vmem, size = 0x9000, scoped, tag = 'internal scratch']
  %s0 = inlined_call_operand.hbm [shape: f32[3,1024], index: 0, kind: input, shape index: {}]
  %s1 = inlined_call_operand.hbm [shape: f32[3,1024], index: 1, kind: input, shape index: {}]
  %s2 = inlined_call_operand.hbm [shape: f32[3,1024], index: 2, kind: output, shape index: {}]
  %s3 = sld [smem:[#allocation0]]
  $region26: #{tpu_custom_call.1} parent=0
    _
  %s5 = ssub.s32 1, %s3
  %s6 = scalar_select 0, %s5, %s3
  $region1: #{tpu_custom_call.1} parent=0
    #allocation2 [shape = 'u8[16384]{0}', space=vmem, size = 0x4000, scoped, tag = 'input window, operand 0, single buffered']
    #allocation3 [shape = 's32[1]{0}', space=sflag, size = 0x4, scoped, tag = 'scoped memory for tpu_custom_call.1']
    #allocation4 [shape = 's32[1]{0}', space=sflag, size = 0x4, scoped, tag = 'scoped memory for tpu_custom_call.1']
    #allocation5 [shape = 'u8[16384]{0}', space=vmem, size = 0x4000, scoped, tag = 'input window, operand 1, single buffered']
    #allocation6 [shape = 's32[1]{0}', space=sflag, size = 0x4, scoped, tag = 'scoped memory for tpu_custom_call.1']
    #allocation7 [shape = 'u8[16384]{0}', space=vmem, size = 0x4000, scoped, tag = 'output window, operand 0, single buffered']
    %7 = vsyncpa [#allocation3], 0
    %8 = vsyncpa [#allocation6], 0
    %9 = vsyncpa [#allocation4], 0
    // Predicated region
    $region2: #{tpu_custom_call.1} parent=1 // pred_check
      _
    $region3: #{tpu_custom_call.1} parent=1 // pred_check_branch
      %11 = sbr.rel (0) target = $region5
    $region4: #{tpu_custom_call.1} parent=1 // pred_region
      %13 = vsyncadd [#allocation3], 0
      %s15 = sshll.u32 %s0, 4
      %s16 = int_to_ptr.hbm [resolvable:$true] %s15
      %s17 = sshll.u32 [#allocation2], 4
      %s18 = int_to_ptr.vmem [resolvable:$true] %s17
      %20 = dma.hbm_to_vmem [thread:$0]  %s16, 512, %s18, [#allocation3]
    $region5: #{tpu_custom_call.1} parent=1 // pred_fallthru
      _
    // Predicated region
    $region6: #{tpu_custom_call.1} parent=1 // pred_check
      _
    $region7: #{tpu_custom_call.1} parent=1 // pred_check_branch
      %22 = sbr.rel (0) target = $region9
    $region8: #{tpu_custom_call.1} parent=1 // pred_region
      %24 = vsyncadd [#allocation6], 0
      %s26 = sshll.u32 %s1, 4
      %s27 = int_to_ptr.hbm [resolvable:$true] %s26
      %s28 = sshll.u32 [#allocation5], 4
      %s29 = int_to_ptr.vmem [resolvable:$true] %s28
      %31 = dma.hbm_to_vmem [thread:$0]  %s27, 512, %s29, [#allocation6]
    $region9: #{tpu_custom_call.1} parent=1 // pred_fallthru
      _
    // Predicated region
    $region10: #{tpu_custom_call.1} parent=1 // pred_check
      _
    $region11: #{tpu_custom_call.1} parent=1 // pred_check_branch
      %33 = sbr.rel (0) target = $region13
    $region12: #{tpu_custom_call.1} parent=1 // pred_region
      %35 = dma.done [#allocation3], 512
    $region13: #{tpu_custom_call.1} parent=1 // pred_fallthru
      _
    // Predicated region
    $region14: #{tpu_custom_call.1} parent=1 // pred_check
      _
    $region15: #{tpu_custom_call.1} parent=1 // pred_check_branch
      %37 = sbr.rel (0) target = $region17
    $region16: #{tpu_custom_call.1} parent=1 // pred_region
      %39 = dma.done [#allocation6], 512
    $region17: #{tpu_custom_call.1} parent=1 // pred_fallthru
      _
    %v40 = vld [vmem:[#allocation2] sm:$0x77]
    %v41 = vld [vmem:[#allocation2 + $0x8] sm:$0x77]
    %v42 = vld [vmem:[#allocation2 + $0x10] sm:$0x77]
    %v43 = vld [vmem:[#allocation2 + $0x18] sm:$0x77]
    %v44 = vld [vmem:[#allocation5] sm:$0x77]
    %v45 = vld [vmem:[#allocation5 + $0x8] sm:$0x77]
    %v46 = vld [vmem:[#allocation5 + $0x10] sm:$0x77]
    %v47 = vld [vmem:[#allocation5 + $0x18] sm:$0x77]
    %v48 = vsub.f32 %v40, %v44
    %v49 = vsub.f32 %v41, %v45
    %v50 = vsub.f32 %v42, %v46
    %v51 = vsub.f32 %v43, %v47
    %v52 = vand.u32 2147483647, %v48
    %v53 = vand.u32 2147483647, %v49
    %v54 = vand.u32 2147483647, %v50
    %v55 = vand.u32 2147483647, %v51
    %v56 = vmul.f32 %v52, 4.5
    %v57 = vmul.f32 %v53, 4.5
    %v58 = vmul.f32 %v54, 4.5
    %v59 = vmul.f32 %v55, 4.5
    %v60 = vmul.f32 %v56, %v52
    %v61 = vmul.f32 %v57, %v53
    %v62 = vmul.f32 %v58, %v54
    %v63 = vmul.f32 %v59, %v55
    %v64 = vsub.f32 %v52, 0.055555556
    %v65 = vsub.f32 %v53, 0.055555556
    %v66 = vsub.f32 %v54, 0.055555556
    %v67 = vsub.f32 %v55, 0.055555556
    %vm68 = vcmp.le.f32.partialorder %v52, 0.01
    %vm69 = vcmp.le.f32.partialorder %v53, 0.01
    %vm70 = vcmp.le.f32.partialorder %v54, 0.01
    %vm71 = vcmp.le.f32.partialorder %v55, 0.01
    %vm72 = vcmp.le.f32.partialorder %v52, 0.11111111
    %vm73 = vcmp.le.f32.partialorder %v53, 0.11111111
    %vm74 = vcmp.le.f32.partialorder %v54, 0.11111111
    %vm75 = vcmp.le.f32.partialorder %v55, 0.11111111
    %v76 = vsel %vm72, %v60, %v64
    %v77 = vsel %vm73, %v61, %v65
    %v78 = vsel %vm74, %v62, %v66
    %v79 = vsel %vm75, %v63, %v67
    %v80 = vsel %vm68, 0.0, %v76
    %v81 = vsel %vm69, 0.0, %v77
    %v82 = vsel %vm70, 0.0, %v78
    %v83 = vsel %vm71, 0.0, %v79
    %84 = vst [vmem:[#allocation7] sm:$0x77] %v80
    %85 = vst [vmem:[#allocation7 + $0x8] sm:$0x77] %v81
    %86 = vst [vmem:[#allocation7 + $0x10] sm:$0x77] %v82
    %87 = vst [vmem:[#allocation7 + $0x18] sm:$0x77] %v83
    // Predicated region
    $region18: #{tpu_custom_call.1} parent=1 // pred_check
      _
    $region19: #{tpu_custom_call.1} parent=1 // pred_check_branch
      %89 = sbr.rel (0) target = $region21
    $region20: #{tpu_custom_call.1} parent=1 // pred_region
      %91 = vsyncadd [#allocation4], 0
      %s93 = sshll.u32 [#allocation7], 4
      %s94 = int_to_ptr.vmem [resolvable:$true] %s93
      %s95 = sshll.u32 %s2, 4
      %s96 = int_to_ptr.hbm [resolvable:$true] %s95
      %98 = dma.vmem_to_hbm [thread:$0]  %s94, 512, %s96, [#allocation4]
    $region21: #{tpu_custom_call.1} parent=1 // pred_fallthru
      _
    // Predicated region
    $region22: #{tpu_custom_call.1} parent=1 // pred_check
      _
    $region23: #{tpu_custom_call.1} parent=1 // pred_check_branch
      %100 = sbr.rel (0) target = $region25
    $region24: #{tpu_custom_call.1} parent=1 // pred_region
      %102 = dma.done [#allocation4], 512
    $region25: #{tpu_custom_call.1} parent=1 // pred_fallthru
      _
    %103 = vsyncpa [#allocation3], 1
    %104 = vsyncpa [#allocation6], 1
    %105 = vsyncpa [#allocation4], 1

</llo_original>
